<compile_context>
chip_gen: v7x
topology: tpu7x:2x2x1
jax: 0.10.0
libtpu: 0.0.40
codegen_flags: <defaults>
</compile_context>

<pallas_src>
import math

import jax
import jax.numpy as jnp
from jax.experimental import pallas as pl
from jax.experimental.pallas import tpu as pltpu


_MIN_CONTIG_BYTES = 512          # below this, per-row DMA descriptors get sub-cache-line
_MIN_CHUNK_BYTES = 256 << 10     # target minimum bytes per in-flight DMA chunk
_MAX_CHUNKS = 8                  # max in-flight chunks per input (per grid step)
_CORE_SPLIT_MIN_BYTES = 1 << 20  # only split the copy across a grid above this
_VMEM_TILE_TARGET_BYTES = 2 << 20  # fallback path: ~2 MiB output tiles


def _sublane_pack(dtype):
    """Sublane packing of the dtype (8 for f32, 16 for bf16, 32 for int8)."""
    itemsize = jnp.dtype(dtype).itemsize
    if itemsize not in (1, 2, 4):
        return None
    return 8 * (4 // itemsize)


def _chunk_bounds(n_rows, row_bytes,
                  min_chunk_bytes=_MIN_CHUNK_BYTES, max_chunks=_MAX_CHUNKS):
    """Static (start, length) chunks of the `pre` axis, each >= min_chunk_bytes."""
    if n_rows <= 1:
        return [(0, n_rows)]
    total = n_rows * row_bytes
    n = max(1, min(max_chunks, n_rows, total // max(min_chunk_bytes, 1)))
    base, rem = divmod(n_rows, n)
    bounds, start = [], 0
    for i in range(n):
        length = base + (1 if i < rem else 0)
        bounds.append((start, length))
        start += length
    return bounds


# ---------------------------------------------------------------------------
# Fast path: pure HBM->HBM DMAs (aligned channel sizes, non-tiny rows).
# ---------------------------------------------------------------------------

def _make_concat_dma_kernel(channel_sizes, pre_per_prog, chunk_bounds):
    """One async DMA per (input, pre-chunk); all started before any wait."""
    n_in = len(channel_sizes)

    def kernel(*refs):
        in_refs = refs[:n_in]
        out_ref = refs[n_in]
        sem = refs[n_in + 1]

        base = pl.program_id(0) * pre_per_prog  # this grid step's share of `pre`
        copies = []
        off = 0
        for k, (r, c) in enumerate(zip(in_refs, channel_sizes)):
            for j, (p0, plen) in enumerate(chunk_bounds):
                cp = pltpu.make_async_copy(
                    r.at[pl.ds(base + p0, plen), :, :],
                    out_ref.at[pl.ds(base + p0, plen), off:off + c, :],
                    sem.at[k, j],
                )
                cp.start()
                copies.append(cp)
            off += c
        # All DMAs in flight; drain them.
        for cp in copies:
            cp.wait()

    return kernel


def _concat_hbm_dma(xs_3d, pre, sizes, c_total, post, dtype):
    itemsize = jnp.dtype(dtype).itemsize
    total_out_bytes = pre * c_total * post * itemsize

    # v7x has 2 TensorCores sharing HBM: split the copy across a 2-wide
    # "parallel" grid so each core issues half the DMAs.  On 1-TC chips this is
    # just two sequential half-copies (negligible extra launch overhead).
    n_split = 2 if (pre % 2 == 0 and total_out_bytes >= _CORE_SPLIT_MIN_BYTES) else 1
    pre_per_prog = pre // n_split

    max_row_bytes = max(s * post * itemsize for s in sizes)
    chunk_bounds = _chunk_bounds(pre_per_prog, max_row_bytes)

    return pl.pallas_call(
        _make_concat_dma_kernel(sizes, pre_per_prog, chunk_bounds),
        out_shape=jax.ShapeDtypeStruct((pre, c_total, post), dtype),
        grid=(n_split,),
        # Everything stays in HBM; the kernel moves data with explicit DMAs.
        in_specs=[pl.BlockSpec(memory_space=pl.ANY) for _ in xs_3d],
        out_specs=pl.BlockSpec(memory_space=pl.ANY),
        scratch_shapes=[pltpu.SemaphoreType.DMA((len(xs_3d), len(chunk_bounds)))],
        compiler_params=pltpu.CompilerParams(
            dimension_semantics=("parallel",)),
    )(*xs_3d)


# ---------------------------------------------------------------------------
# Fallback path: VMEM-tiled, lane-dense copy on the 2-D view (pre, size*post).
# Handles sublane-misaligned channel counts, last-axis concat and tiny rows.
# ---------------------------------------------------------------------------

def _make_concat_vmem_kernel(n_in):
    def kernel(*refs):
        in_refs = refs[:n_in]
        out_ref = refs[n_in]
        out_ref[...] = jnp.concatenate([r[...] for r in in_refs], axis=-1)

    return kernel


def _concat_vmem(xs_3d, pre, sizes, c_total, post, dtype):
    itemsize = jnp.dtype(dtype).itemsize
    widths = [s * post for s in sizes]
    w_total = c_total * post
    # 2-D view: concat along `dim` of a row-major (pre, s, post) array is a
    # concat of contiguous per-row chunks, i.e. a last-axis concat of
    # (pre, s*post) arrays.  This keeps the output store lane-dense.
    xs_2d = [x.reshape(pre, w) for x, w in zip(xs_3d, widths)]

    row_bytes = w_total * itemsize
    tile_pre = min(pre, max(1, _VMEM_TILE_TARGET_BYTES // max(row_bytes, 1)))
    if tile_pre < pre:
        tile_pre = max(8, (tile_pre // 8) * 8)  # sublane dim: multiple of 8 (or full)
    grid = (pl.cdiv(pre, tile_pre),)
    # TODO(synk): extremely wide rows (> a few MiB) would need an extra grid
    # axis over the width to stay within v7x's 64 MiB VMEM.

    out_2d = pl.pallas_call(
        _make_concat_vmem_kernel(len(xs_2d)),
        out_shape=jax.ShapeDtypeStruct((pre, w_total), dtype),
        grid=grid,
        in_specs=[pl.BlockSpec((tile_pre, w), lambda i: (i, 0)) for w in widths],
        out_specs=pl.BlockSpec((tile_pre, w_total), lambda i: (i, 0)),
        compiler_params=pltpu.CompilerParams(
            dimension_semantics=("parallel",)),
    )(*xs_2d)
    return out_2d.reshape(pre, c_total, post)


# ---------------------------------------------------------------------------
# Public wrapper (== torch.cat(x, dim) / Concat.forward).
# ---------------------------------------------------------------------------

def concat(xs, dimension=1):
    """Concatenate a list of same-rank tensors along `dimension`."""
    xs = list(xs)
    assert len(xs) >= 1
    rank = xs[0].ndim
    d = dimension % rank
    dtype = xs[0].dtype
    base_shape = xs[0].shape
    for x in xs:
        assert x.ndim == rank and x.dtype == dtype
        for ax in range(rank):
            if ax != d:
                assert x.shape[ax] == base_shape[ax], (x.shape, base_shape)

    c_all = sum(int(x.shape[d]) for x in xs)
    out_shape = base_shape[:d] + (c_all,) + base_shape[d + 1:]

    # Drop zero-size inputs along the concat axis (avoid zero-length DMAs).
    xs = [x for x in xs if x.shape[d] > 0]
    if len(xs) == 0:
        return jnp.zeros(out_shape, dtype)
    if len(xs) == 1:
        return xs[0].reshape(out_shape)

    pre = math.prod(base_shape[:d])
    post = math.prod(base_shape[d + 1:])
    if pre == 0 or post == 0:  # degenerate empty result
        return jnp.concatenate(xs, axis=d)

    sizes = [int(x.shape[d]) for x in xs]
    c_total = sum(sizes)
    itemsize = jnp.dtype(dtype).itemsize
    xs_3d = [x.reshape(pre, s, post) for x, s in zip(xs, sizes)]

    pack = _sublane_pack(dtype)
    aligned = pack is not None and all(s % pack == 0 for s in sizes)
    big_rows = all(s * post * itemsize >= _MIN_CONTIG_BYTES for s in sizes)

    if aligned and big_rows:
        out_3d = _concat_hbm_dma(xs_3d, pre, sizes, c_total, post, dtype)
    else:
        out_3d = _concat_vmem(xs_3d, pre, sizes, c_total, post, dtype)

    return out_3d.reshape(out_shape)


if __name__ == "__main__":
    key = jax.random.PRNGKey(0)
    ks = jax.random.split(key, 8)

    def check(xs, dim):
        out = jax.block_until_ready(concat(list(xs), dimension=dim))
        ref = jnp.concatenate(list(xs), axis=dim)
        assert out.shape == ref.shape, (out.shape, ref.shape)
        assert out.dtype == ref.dtype, (out.dtype, ref.dtype)
        assert jnp.array_equal(out, ref), "mismatch vs jnp.concatenate reference"

    # 1) Sublane-aligned f32 channel concat -> fast HBM->HBM DMA path.
    check([jax.random.normal(ks[0], (2, 8, 16, 16), dtype=jnp.float32),
           jax.random.normal(ks[1], (2, 16, 16, 16), dtype=jnp.float32),
           jax.random.normal(ks[2], (2, 8, 16, 16), dtype=jnp.float32)], 1)

    # 2) Misaligned channels (4/8/4) + a zero-size input -> VMEM fallback path.
    check([jax.random.normal(ks[3], (2, 4, 16, 16), dtype=jnp.float32),
           jnp.zeros((2, 0, 16, 16), dtype=jnp.float32),
           jax.random.normal(ks[4], (2, 8, 16, 16), dtype=jnp.float32),
           jax.random.normal(ks[5], (2, 4, 16, 16), dtype=jnp.float32)], 1)

    # 3) bf16 with channel counts aligned to its pack of 16 -> DMA path.
    check([jax.random.normal(ks[6], (2, 16, 8, 8)).astype(jnp.bfloat16),
           jax.random.normal(ks[7], (2, 16, 8, 8)).astype(jnp.bfloat16)], 1)

    # 4) Last-axis concat (tiny contiguous chunks) -> VMEM fallback path.
    check([jax.random.normal(ks[0], (2, 8, 16), dtype=jnp.float32),
           jax.random.normal(ks[1], (2, 8, 16), dtype=jnp.float32)], -1)

    # 5) Larger aligned case: exercises the 2-way grid split + chunked DMAs.
    check([jax.random.normal(ks[2], (8, 32, 32, 32), dtype=jnp.float32),
           jax.random.normal(ks[3], (8, 32, 32, 32), dtype=jnp.float32)], 1)

    print("KERNEL_OK")
</pallas_src>

<mosaic_0001>
module attributes {stable_mosaic.version = 11 : i64} {
  func.func @kernel(%arg0: i32, %arg1: memref<2x8x256xf32, #tpu.memory_space<any>>, %arg2: memref<2x16x256xf32, #tpu.memory_space<any>>, %arg3: memref<2x8x256xf32, #tpu.memory_space<any>>, %arg4: memref<2x32x256xf32, #tpu.memory_space<any>>, %arg5: memref<3x1x!tpu.dma_semaphore, #tpu.memory_space<semaphore_mem>>) attributes {dimension_semantics = [#tpu.dimension_semantics<parallel>], iteration_bounds = array<i64: 1>, scalar_prefetch = 0 : i64, scratch_operands = 1 : i64, tpu.core_type = #tpu.core_type<tc>, window_params = [{}, {}, {}, {}]} {
    %c2_i32 = arith.constant 2 : i32
    %0 = arith.muli %arg0, %c2_i32 : i32
    %c0_i32 = arith.constant 0 : i32
    %1 = arith.addi %0, %c0_i32 : i32
    %c0_i32_0 = arith.constant 0 : i32
    %2 = arith.addi %0, %c0_i32_0 : i32
    %c0_i32_1 = arith.constant 0 : i32
    %c0_i32_2 = arith.constant 0 : i32
    %c0_i32_3 = arith.constant 0 : i32
    %c0_i32_4 = arith.constant 0 : i32
    %3 = tpu.memref_slice %arg1[%1, %c0_i32_3, %c0_i32_4] : memref<2x8x256xf32, #tpu.memory_space<any>> -> memref<2x8x256xf32, #tpu.memory_space<any>>
    %c0_i32_5 = arith.constant 0 : i32
    %c0_i32_6 = arith.constant 0 : i32
    %4 = tpu.memref_slice %arg4[%2, %c0_i32_5, %c0_i32_6] : memref<2x32x256xf32, #tpu.memory_space<any>> -> memref<2x8x256xf32, #tpu.memory_space<any>>
    %5 = tpu.memref_slice %arg5[%c0_i32_1, %c0_i32_2] : memref<3x1x!tpu.dma_semaphore, #tpu.memory_space<semaphore_mem>> -> memref<1x1x!tpu.dma_semaphore, #tpu.memory_space<semaphore_mem>>
    %6 = tpu.memref_squeeze %5 : memref<1x1x!tpu.dma_semaphore, #tpu.memory_space<semaphore_mem>> -> memref<!tpu.dma_semaphore, #tpu.memory_space<semaphore_mem>>
    tpu.enqueue_dma source(%3 : memref<2x8x256xf32, #tpu.memory_space<any>>) target(%4 : memref<2x8x256xf32, #tpu.memory_space<any>>) target_semaphore(%6 : memref<!tpu.dma_semaphore, #tpu.memory_space<semaphore_mem>>)
    %c0_i32_7 = arith.constant 0 : i32
    %7 = arith.addi %0, %c0_i32_7 : i32
    %c0_i32_8 = arith.constant 0 : i32
    %8 = arith.addi %0, %c0_i32_8 : i32
    %c1_i32 = arith.constant 1 : i32
    %c0_i32_9 = arith.constant 0 : i32
    %c0_i32_10 = arith.constant 0 : i32
    %c0_i32_11 = arith.constant 0 : i32
    %9 = tpu.memref_slice %arg2[%7, %c0_i32_10, %c0_i32_11] : memref<2x16x256xf32, #tpu.memory_space<any>> -> memref<2x16x256xf32, #tpu.memory_space<any>>
    %c8_i32 = arith.constant 8 : i32
    %c0_i32_12 = arith.constant 0 : i32
    %10 = tpu.memref_slice %arg4[%8, %c8_i32, %c0_i32_12] : memref<2x32x256xf32, #tpu.memory_space<any>> -> memref<2x16x256xf32, #tpu.memory_space<any>>
    %11 = tpu.memref_slice %arg5[%c1_i32, %c0_i32_9] : memref<3x1x!tpu.dma_semaphore, #tpu.memory_space<semaphore_mem>> -> memref<1x1x!tpu.dma_semaphore, #tpu.memory_space<semaphore_mem>>
    %12 = tpu.memref_squeeze %11 : memref<1x1x!tpu.dma_semaphore, #tpu.memory_space<semaphore_mem>> -> memref<!tpu.dma_semaphore, #tpu.memory_space<semaphore_mem>>
    tpu.enqueue_dma source(%9 : memref<2x16x256xf32, #tpu.memory_space<any>>) target(%10 : memref<2x16x256xf32, #tpu.memory_space<any>>) target_semaphore(%12 : memref<!tpu.dma_semaphore, #tpu.memory_space<semaphore_mem>>)
    %c0_i32_13 = arith.constant 0 : i32
    %13 = arith.addi %0, %c0_i32_13 : i32
    %c0_i32_14 = arith.constant 0 : i32
    %14 = arith.addi %0, %c0_i32_14 : i32
    %c2_i32_15 = arith.constant 2 : i32
    %c0_i32_16 = arith.constant 0 : i32
    %c0_i32_17 = arith.constant 0 : i32
    %c0_i32_18 = arith.constant 0 : i32
    %15 = tpu.memref_slice %arg3[%13, %c0_i32_17, %c0_i32_18] : memref<2x8x256xf32, #tpu.memory_space<any>> -> memref<2x8x256xf32, #tpu.memory_space<any>>
    %c24_i32 = arith.constant 24 : i32
    %c0_i32_19 = arith.constant 0 : i32
    %16 = tpu.memref_slice %arg4[%14, %c24_i32, %c0_i32_19] : memref<2x32x256xf32, #tpu.memory_space<any>> -> memref<2x8x256xf32, #tpu.memory_space<any>>
    %17 = tpu.memref_slice %arg5[%c2_i32_15, %c0_i32_16] : memref<3x1x!tpu.dma_semaphore, #tpu.memory_space<semaphore_mem>> -> memref<1x1x!tpu.dma_semaphore, #tpu.memory_space<semaphore_mem>>
    %18 = tpu.memref_squeeze %17 : memref<1x1x!tpu.dma_semaphore, #tpu.memory_space<semaphore_mem>> -> memref<!tpu.dma_semaphore, #tpu.memory_space<semaphore_mem>>
    tpu.enqueue_dma source(%15 : memref<2x8x256xf32, #tpu.memory_space<any>>) target(%16 : memref<2x8x256xf32, #tpu.memory_space<any>>) target_semaphore(%18 : memref<!tpu.dma_semaphore, #tpu.memory_space<semaphore_mem>>)
    %c0_i32_20 = arith.constant 0 : i32
    %c0_i32_21 = arith.constant 0 : i32
    %c0_i32_22 = arith.constant 0 : i32
    %c0_i32_23 = arith.constant 0 : i32
    %19 = tpu.memref_slice %arg1[%1, %c0_i32_22, %c0_i32_23] : memref<2x8x256xf32, #tpu.memory_space<any>> -> memref<2x8x256xf32, #tpu.memory_space<any>>
    %c0_i32_24 = arith.constant 0 : i32
    %c0_i32_25 = arith.constant 0 : i32
    %20 = tpu.memref_slice %arg4[%2, %c0_i32_24, %c0_i32_25] : memref<2x32x256xf32, #tpu.memory_space<any>> -> memref<2x8x256xf32, #tpu.memory_space<any>>
    %21 = tpu.memref_slice %arg5[%c0_i32_20, %c0_i32_21] : memref<3x1x!tpu.dma_semaphore, #tpu.memory_space<semaphore_mem>> -> memref<1x1x!tpu.dma_semaphore, #tpu.memory_space<semaphore_mem>>
    %22 = tpu.memref_squeeze %21 : memref<1x1x!tpu.dma_semaphore, #tpu.memory_space<semaphore_mem>> -> memref<!tpu.dma_semaphore, #tpu.memory_space<semaphore_mem>>
    tpu.wait_dma2 semaphore(%22 : memref<!tpu.dma_semaphore, #tpu.memory_space<semaphore_mem>>) src(%19 : memref<2x8x256xf32, #tpu.memory_space<any>>) dst(%20 : memref<2x8x256xf32, #tpu.memory_space<any>>)
    %c1_i32_26 = arith.constant 1 : i32
    %c0_i32_27 = arith.constant 0 : i32
    %c0_i32_28 = arith.constant 0 : i32
    %c0_i32_29 = arith.constant 0 : i32
    %23 = tpu.memref_slice %arg2[%7, %c0_i32_28, %c0_i32_29] : memref<2x16x256xf32, #tpu.memory_space<any>> -> memref<2x16x256xf32, #tpu.memory_space<any>>
    %c8_i32_30 = arith.constant 8 : i32
    %c0_i32_31 = arith.constant 0 : i32
    %24 = tpu.memref_slice %arg4[%8, %c8_i32_30, %c0_i32_31] : memref<2x32x256xf32, #tpu.memory_space<any>> -> memref<2x16x256xf32, #tpu.memory_space<any>>
    %25 = tpu.memref_slice %arg5[%c1_i32_26, %c0_i32_27] : memref<3x1x!tpu.dma_semaphore, #tpu.memory_space<semaphore_mem>> -> memref<1x1x!tpu.dma_semaphore, #tpu.memory_space<semaphore_mem>>
    %26 = tpu.memref_squeeze %25 : memref<1x1x!tpu.dma_semaphore, #tpu.memory_space<semaphore_mem>> -> memref<!tpu.dma_semaphore, #tpu.memory_space<semaphore_mem>>
    tpu.wait_dma2 semaphore(%26 : memref<!tpu.dma_semaphore, #tpu.memory_space<semaphore_mem>>) src(%23 : memref<2x16x256xf32, #tpu.memory_space<any>>) dst(%24 : memref<2x16x256xf32, #tpu.memory_space<any>>)
    %c2_i32_32 = arith.constant 2 : i32
    %c0_i32_33 = arith.constant 0 : i32
    %c0_i32_34 = arith.constant 0 : i32
    %c0_i32_35 = arith.constant 0 : i32
    %27 = tpu.memref_slice %arg3[%13, %c0_i32_34, %c0_i32_35] : memref<2x8x256xf32, #tpu.memory_space<any>> -> memref<2x8x256xf32, #tpu.memory_space<any>>
    %c24_i32_36 = arith.constant 24 : i32
    %c0_i32_37 = arith.constant 0 : i32
    %28 = tpu.memref_slice %arg4[%14, %c24_i32_36, %c0_i32_37] : memref<2x32x256xf32, #tpu.memory_space<any>> -> memref<2x8x256xf32, #tpu.memory_space<any>>
    %29 = tpu.memref_slice %arg5[%c2_i32_32, %c0_i32_33] : memref<3x1x!tpu.dma_semaphore, #tpu.memory_space<semaphore_mem>> -> memref<1x1x!tpu.dma_semaphore, #tpu.memory_space<semaphore_mem>>
    %30 = tpu.memref_squeeze %29 : memref<1x1x!tpu.dma_semaphore, #tpu.memory_space<semaphore_mem>> -> memref<!tpu.dma_semaphore, #tpu.memory_space<semaphore_mem>>
    tpu.wait_dma2 semaphore(%30 : memref<!tpu.dma_semaphore, #tpu.memory_space<semaphore_mem>>) src(%27 : memref<2x8x256xf32, #tpu.memory_space<any>>) dst(%28 : memref<2x8x256xf32, #tpu.memory_space<any>>)
    return
  }
}

</mosaic_0001>

<llo_original>
// kernel: tpu_custom_call.1
$region0: #{tpu_custom_call.1}
  #allocation0 [shape = 'u32[]', space=smem, size = 0x4, offset = 0x4, fixed_abs, tag = 'smem constant byte address 0x4 - core index']
  #allocation1 [shape = 'u32[144,128]{1,0:T(1,128)}', space=vmem, size = 0x12000, scoped, tag = 'internal scratch']
  #allocation2 [shape = 's32[3]{0}', space=sflag, size = 0xc, scoped, tag = 'scratch operand']
  #allocation3 [shape = 's32[]', space=sflag, size = 0x4, offset = 0, fixed_abs, tag = 'sflag constant byte address 0x0 - dummy sync flag']
  #allocation5 [shape = 's32[]', space=sflag, size = 0x4, offset = 0, fixed_abs, tag = 'sflag constant byte address 0x0 - dummy sync flag']
  #allocation7 [shape = 's32[]', space=sflag, size = 0x4, offset = 0, fixed_abs, tag = 'sflag constant byte address 0x0 - dummy sync flag']
  %s0 = inlined_call_operand.hbm [shape: f32[2,8,256], index: 0, kind: input, shape index: {}]
  %s1 = inlined_call_operand.hbm [shape: f32[2,16,256], index: 1, kind: input, shape index: {}]
  %s2 = inlined_call_operand.hbm [shape: f32[2,8,256], index: 2, kind: input, shape index: {}]
  %s3 = inlined_call_operand.hbm [shape: f32[2,32,256], index: 3, kind: output, shape index: {}]
  %s4 = sld [smem:[#allocation0]]
  $region2: #{tpu_custom_call.1} parent=0
    _
  %s6 = ssub.s32 1, %s4
  %s7 = scalar_select 0, %s6, %s4
  $region1: #{tpu_custom_call.1} parent=0
    #allocation4 [shape = 'u32[3]{0}', space=smem, size = 0xc, scoped, tag = 'DMA stride descriptor']
    #allocation6 [shape = 'u32[3]{0}', space=smem, size = 0xc, scoped, tag = 'DMA stride descriptor']
    #allocation8 [shape = 'u32[3]{0}', space=smem, size = 0xc, scoped, tag = 'DMA stride descriptor']
    %s8 = smul.u32 0, 2
    %s9 = smul.u32 %s8, 2
    %s10 = smul.addr %s9, 128
    %s11 = scalar_lea.hbm %s0, %s10
    %s12 = smul.u32 %s8, 8
    %s13 = smul.addr %s12, 128
    %s14 = scalar_lea.hbm %s3, %s13
    %s16 = sshll.u32 1, 14
    %s17 = sxor.u32 4294967295, %s16
    %s20 = sshll.u32 3, 24
    %s21 = sxor.u32 4294967295, %s20
    %s22 = sand.u32 0, %s21
    %s24 = sor.u32 %s22, 0
    %27 = sst [smem:[#allocation4]] 256
    %s28 = scalar_lea.smem [#allocation4], 1
    %29 = sst [smem:[%s28]] 1024
    %s30 = scalar_lea.smem [#allocation4], 2
    %31 = sst [smem:[%s30]] 16
    %33 = dma.general %s11, 512, %s14, [#allocation2], [#allocation3], [#allocation4], %s24, 0
    %s34 = smul.u32 %s8, 4
    %s35 = smul.addr %s34, 128
    %s36 = scalar_lea.hbm %s1, %s35
    %s37 = sadd.s32 2, %s12
    %s38 = smul.addr %s37, 128
    %s39 = scalar_lea.hbm %s3, %s38
    %s40 = scalar_lea.sflag [#allocation2], 1
    %s42 = sshll.u32 1, 14
    %s43 = sxor.u32 4294967295, %s42
    %s46 = sshll.u32 3, 24
    %s47 = sxor.u32 4294967295, %s46
    %s48 = sand.u32 0, %s47
    %s50 = sor.u32 %s48, 0
    %53 = sst [smem:[#allocation6]] 512
    %s54 = scalar_lea.smem [#allocation6], 1
    %55 = sst [smem:[%s54]] 1024
    %s56 = scalar_lea.smem [#allocation6], 2
    %57 = sst [smem:[%s56]] 32
    %59 = dma.general %s36, 1024, %s39, %s40, [#allocation5], [#allocation6], %s50, 0
    %s60 = smul.addr %s9, 128
    %s61 = scalar_lea.hbm %s2, %s60
    %s62 = sadd.s32 6, %s12
    %s63 = smul.addr %s62, 128
    %s64 = scalar_lea.hbm %s3, %s63
    %s65 = scalar_lea.sflag [#allocation2], 2
    %s67 = sshll.u32 1, 14
    %s68 = sxor.u32 4294967295, %s67
    %s71 = sshll.u32 3, 24
    %s72 = sxor.u32 4294967295, %s71
    %s73 = sand.u32 0, %s72
    %s75 = sor.u32 %s73, 0
    %78 = sst [smem:[#allocation8]] 256
    %s79 = scalar_lea.smem [#allocation8], 1
    %80 = sst [smem:[%s79]] 1024
    %s81 = scalar_lea.smem [#allocation8], 2
    %82 = sst [smem:[%s81]] 16
    %84 = dma.general %s61, 512, %s64, %s65, [#allocation7], [#allocation8], %s75, 0
    %s85 = smul.u32 8, 2
    %s86 = smul.u32 %s85, 1
    %s87 = smul.u32 %s86, 2
    %s88 = sshll.u32 %s87, 4
    %89 = dma.done [#allocation2], %s88
    %s90 = smul.u32 %s85, 2
    %s91 = smul.u32 %s90, 2
    %s92 = sshll.u32 %s91, 4
    %93 = dma.done %s40, %s92
    %s94 = sshll.u32 %s87, 4
    %95 = dma.done %s65, %s94
  %96 = vsyncmov [#allocation2]
  %s97 = vpop.sfrf %96
  %p98 = scmp.eq.s32.totalorder %s97, 0
  %p99 = pneg %p98
  %101 = shalt.err (%p99)
  %s102 = scalar_lea.sflag [#allocation2], 1
  %103 = vsyncmov %s102
  %s104 = vpop.sfrf %103
  %p105 = scmp.eq.s32.totalorder %s104, 0
  %p106 = pneg %p105
  %108 = shalt.err (%p106)
  %s109 = scalar_lea.sflag [#allocation2], 2
  %110 = vsyncmov %s109
  %s111 = vpop.sfrf %110
  %p112 = scmp.eq.s32.totalorder %s111, 0
  %p113 = pneg %p112
  %115 = shalt.err (%p113)

</llo_original>
